<compile_context>
chip_gen: v7x
topology: tpu7x:2x2x1
jax: 0.10.0
libtpu: 0.0.40
codegen_flags: <defaults>
</compile_context>

<pallas_src>
import jax
import jax.numpy as jnp
from jax.experimental import pallas as pl
from jax.experimental.pallas import tpu as pltpu


# ----------------------------------------------------------------------------
# Kernel
# ----------------------------------------------------------------------------
def _make_kernel(n_layers, n_k, tk_blk):
    """Build the fused-MLP kernel, specialized on static layer/k-step counts."""
    # Sub-chunk the intermediate block when 128-aligned halves exist so the
    # two dependent MXU pushes per step can overlap (dot->pop->dot bubble).
    sub = tk_blk // 2 if (tk_blk % 256 == 0) else tk_blk
    n_sub = tk_blk // sub

    def kernel(x_ref, wg_ref, wd_ref, o_ref, act_ref, *acc):
        # x_ref:   [tm, H]   input activation tile (DMA'd once per M tile)
        # wg_ref:  [H, tk]   gate_proj weight tile (layer axis squeezed)
        # wd_ref:  [tk, H]   down_proj weight tile (layer axis squeezed)
        # o_ref:   [tm, H]   output tile (written only at the last (l, k))
        # act_ref: [tm, H]   VMEM-resident activation carried across layers
        # acc:     ([tm, H] f32 accumulator,) only when n_k > 1
        l = pl.program_id(1)
        k = pl.program_id(2)

        # First step of the first layer for this M tile: load the activation.
        @pl.when(jnp.logical_and(l == 0, k == 0))
        def _():
            act_ref[...] = x_ref[...]

        a = act_ref[...]

        if n_sub == 1:
            # h stays in the weight dtype (MXU accumulates f32 internally).
            h = jnp.dot(a, wg_ref[...], preferred_element_type=wd_ref.dtype)
            partial = jnp.dot(h, wd_ref[...],
                              preferred_element_type=jnp.float32)
        else:
            partial = None
            for s in range(n_sub):
                lo, hi = s * sub, (s + 1) * sub
                h = jnp.dot(a, wg_ref[:, lo:hi],
                            preferred_element_type=wd_ref.dtype)
                p = jnp.dot(h, wd_ref[lo:hi, :],
                            preferred_element_type=jnp.float32)
                partial = p if partial is None else partial + p

        if n_k == 1:
            # No reduction over the intermediate axis: commit directly
            # (no accumulator scratch, no store-then-reload).
            act_ref[...] = partial.astype(act_ref.dtype)

            @pl.when(l == n_layers - 1)
            def _():
                o_ref[...] = partial.astype(o_ref.dtype)
        else:
            acc_ref = acc[0]

            @pl.when(k == 0)
            def _():
                acc_ref[...] = partial

            @pl.when(jnp.logical_and(k > 0, k < n_k - 1))
            def _():
                acc_ref[...] += partial

            @pl.when(k == n_k - 1)
            def _():
                # Fuse the final add with the downcast/commit: the summed
                # f32 result is never stored back to acc_ref.
                total = acc_ref[...] + partial
                act_ref[...] = total.astype(act_ref.dtype)

                @pl.when(l == n_layers - 1)
                def _():
                    o_ref[...] = total.astype(o_ref.dtype)

    return kernel


# ----------------------------------------------------------------------------
# Tile selection (VMEM-budget aware, padding-safe)
# ----------------------------------------------------------------------------
def _round_up(x, m):
    return ((x + m - 1) // m) * m


def _vmem_budget_bytes():
    """~82% of physical VMEM: 105 MiB on v5e/v6e (128 MiB), 52 MiB on v7x."""
    try:
        phys = pltpu.get_tpu_info().vmem_capacity_bytes
    except Exception:
        phys = 64 << 20  # conservative fallback, safe on every generation
    return int(phys * 0.82)


def _select_tiles(m, hidden, inter, itemsize, vmem_budget,
                  tm_override=None, tk_override=None):
    # --- intermediate tile (reduction axis) ---
    if tk_override is not None:
        tk = tk_override
        inter_p = _round_up(inter, tk)
    elif inter <= 512:
        tk, inter_p = inter, inter          # full-dim block, always legal
    else:
        tk = 0
        for t in range(512, 127, -128):     # largest 128-aligned divisor <=512
            if inter % t == 0:
                tk, inter_p = t, inter
                break
        if tk == 0:                         # awkward size: pad, don't blow VMEM
            tk, inter_p = 512, _round_up(inter, 512)

    # --- M tile: as large as the VMEM budget allows (weight-reuse lever) ---
    per_tm = hidden * (5 * itemsize + 4)    # 2x(x)+2x(out)+act + f32 acc
    fixed = 4 * hidden * tk * itemsize      # Wg + Wd, double-buffered
    tm_cap = max((vmem_budget - fixed) // per_tm, 8)
    tm_cap = max((tm_cap // 8) * 8, 8)

    if tm_override is not None:
        tm = tm_override
    else:
        m8 = _round_up(m, 8)
        if m8 <= tm_cap:
            tm = m8                         # single M tile: weights streamed once
        elif tm_cap >= 512:
            tm = (tm_cap // 256) * 256
        elif tm_cap >= 128:
            tm = (tm_cap // 128) * 128
        else:
            tm = tm_cap
    m_p = _round_up(m, tm)
    return tm, tk, m_p, inter_p


# ----------------------------------------------------------------------------
# pallas_call wrapper
# ----------------------------------------------------------------------------
def _fused_mlps(x2d, wg_stack, wd_stack, tm_override=None, tk_override=None):
    """x2d: [M, H]; wg_stack: [L, H, I]; wd_stack: [L, I, H] (both [in, out])."""
    m, hidden = x2d.shape
    n_layers, _, inter = wg_stack.shape
    itemsize = jnp.dtype(x2d.dtype).itemsize

    vmem_budget = _vmem_budget_bytes()
    tm, tk, m_p, inter_p = _select_tiles(
        m, hidden, inter, itemsize, vmem_budget, tm_override, tk_override)

    # Zero padding is semantically inert: padded x rows are sliced off below;
    # padded intermediate columns/rows contribute 0 to the down projection.
    if m_p != m:
        x2d = jnp.pad(x2d, ((0, m_p - m), (0, 0)))
    if inter_p != inter:
        # TODO(synk): pre-pad weights once at init in production, not per call.
        wg_stack = jnp.pad(wg_stack, ((0, 0), (0, 0), (0, inter_p - inter)))
        wd_stack = jnp.pad(wd_stack, ((0, 0), (0, inter_p - inter), (0, 0)))

    n_m, n_k = m_p // tm, inter_p // tk
    grid = (n_m, n_layers, n_k)

    working_set = (4 * tm * hidden * itemsize        # x + out, double-buffered
                   + 4 * hidden * tk * itemsize      # Wg + Wd, double-buffered
                   + tm * hidden * itemsize          # resident activation
                   + (tm * hidden * 4 if n_k > 1 else 0))  # f32 accumulator
    vmem_limit = int(min(max(2 * working_set, 32 << 20), vmem_budget))

    flops = 4 * m_p * inter_p * hidden * n_layers
    # Weights are re-streamed once per M tile (and x/out once each).
    bytes_accessed = int(
        2 * m_p * hidden * itemsize
        + n_m * (wg_stack.size + wd_stack.size) * itemsize)

    scratch = [pltpu.VMEM((tm, hidden), x2d.dtype)]   # layer-resident activation
    if n_k > 1:
        scratch.append(pltpu.VMEM((tm, hidden), jnp.float32))  # f32 accumulator

    out = pl.pallas_call(
        _make_kernel(n_layers, n_k, tk),
        out_shape=jax.ShapeDtypeStruct((m_p, hidden), x2d.dtype),
        grid_spec=pltpu.PrefetchScalarGridSpec(
            num_scalar_prefetch=0,
            grid=grid,
            in_specs=[
                # x: DMA'd once per M tile (block index constant over l, k)
                pl.BlockSpec((tm, hidden), lambda i, l, k: (i, 0)),
                # gate_proj weight tile [H, tk] for layer l, k-th I slice
                pl.BlockSpec((None, hidden, tk), lambda i, l, k: (l, 0, k)),
                # down_proj weight tile [tk, H] for layer l
                pl.BlockSpec((None, tk, hidden), lambda i, l, k: (l, k, 0)),
            ],
            out_specs=pl.BlockSpec((tm, hidden), lambda i, l, k: (i, 0)),
            scratch_shapes=scratch,
        ),
        compiler_params=pltpu.CompilerParams(
            # M axis shards across TensorCores (v7x megacore); layer and
            # reduction axes run sequentially so act/acc stay resident.
            dimension_semantics=("parallel", "arbitrary", "arbitrary"),
            vmem_limit_bytes=vmem_limit,
        ),
        cost_estimate=pl.CostEstimate(
            flops=flops, transcendentals=0, bytes_accessed=bytes_accessed),
    )(x2d, wg_stack, wd_stack)

    return out[:m] if m_p != m else out


_fused_mlps_jit = jax.jit(_fused_mlps,
                          static_argnames=("tm_override", "tk_override"))


# ----------------------------------------------------------------------------
# Module-level helpers (parameter layout, public forward)
# ----------------------------------------------------------------------------
def stack_params(params):
    """Transpose PyTorch [out, in] weights to [in, out] ONCE and stack over
    layers: returns (Wg:[L, H, I], Wd:[L, I, H])."""
    wg = jnp.stack([g for g, _ in params]).transpose(0, 2, 1)
    wd = jnp.stack([d for _, d in params]).transpose(0, 2, 1)
    return wg, wd


def toy_mlps_tp_forward(x, wg_stack, wd_stack, tm=None, tk=None):
    """x: [batch, seq, hidden]; wg_stack/wd_stack from stack_params()."""
    b, s, h = x.shape
    out2d = _fused_mlps_jit(x.reshape(b * s, h), wg_stack, wd_stack,
                            tm_override=tm, tk_override=tk)
    return out2d.reshape(b, s, h)


def init_params(key, num_layers, hidden_size, intermediate_size,
                initializer_range=0.02, dtype=jnp.float32):
    """nn.init.normal_(std=initializer_range) equivalent; PyTorch [out, in]."""
    params = []
    for _ in range(num_layers):
        key, kg, kd = jax.random.split(key, 3)
        gate_w = (jax.random.normal(kg, (intermediate_size, hidden_size),
                                    dtype=jnp.float32) * initializer_range
                  ).astype(dtype)
        down_w = (jax.random.normal(kd, (hidden_size, intermediate_size),
                                    dtype=jnp.float32) * initializer_range
                  ).astype(dtype)
        params.append((gate_w, down_w))
    return params


def _reference(x, params):
    """Pure-JAX reference of the same semantics at highest matmul precision."""
    ref = x
    for gw, dw in params:
        ref = jnp.einsum("bsh,ih->bsi", ref, gw,
                         precision=jax.lax.Precision.HIGHEST)
        ref = jnp.einsum("bsi,hi->bsh", ref, dw,
                         precision=jax.lax.Precision.HIGHEST)
    return ref


if __name__ == "__main__":
    key = jax.random.PRNGKey(0)

    # ---- Test 1: module-consistent small config (hidden=32, inter=64, L=2).
    batch, seq, hidden, inter, n_layers = 2, 8, 32, 64, 2
    key, kx = jax.random.split(key)
    x = jax.random.normal(kx, (batch, seq, hidden), dtype=jnp.float32)
    params = init_params(key, n_layers, hidden, inter)
    wg_stack, wd_stack = stack_params(params)          # one-time transpose/stack
    wg_stack, wd_stack = jax.block_until_ready((wg_stack, wd_stack))

    out = jax.block_until_ready(toy_mlps_tp_forward(x, wg_stack, wd_stack))
    ref = _reference(x, params)
    assert out.shape == (batch, seq, hidden)
    # Tolerance accommodates MXU matmul precision modes while still catching
    # any structural error (wrong layer carry / slice / accumulation).
    assert jnp.allclose(out, ref, atol=5e-4, rtol=5e-3)

    # ---- Test 2: exercise multi-M-tile, k-axis reduction, and M padding.
    hidden2, inter2, layers2 = 128, 256, 2
    b2, s2 = 2, 10                                     # M = 20 -> padded to 24
    key, kx2 = jax.random.split(key)
    x2 = jax.random.normal(kx2, (b2, s2, hidden2), dtype=jnp.float32)
    params2 = init_params(key, layers2, hidden2, inter2)
    wg2, wd2 = stack_params(params2)
    ref2 = _reference(x2, params2)

    # (a) auto tiles: single M tile, single k step, 2-way intermediate split.
    out2a = jax.block_until_ready(toy_mlps_tp_forward(x2, wg2, wd2))
    # (b) forced small tiles: 3 M tiles (with row padding), 2 k steps/layer.
    out2b = jax.block_until_ready(toy_mlps_tp_forward(x2, wg2, wd2, tm=8, tk=128))
    assert jnp.allclose(out2a, ref2, atol=5e-4, rtol=5e-3)
    assert jnp.allclose(out2b, ref2, atol=5e-4, rtol=5e-3)

    print("KERNEL_OK")
</pallas_src>

<mosaic_0001>
module attributes {stable_mosaic.version = 11 : i64} {
  func.func @kernel(%arg0: i32, %arg1: i32, %arg2: i32, %arg3: memref<16x32xf32, #tpu.memory_space<vmem>>, %arg4: memref<1x32x64xf32, #tpu.memory_space<vmem>>, %arg5: memref<1x64x32xf32, #tpu.memory_space<vmem>>, %arg6: memref<16x32xf32, #tpu.memory_space<vmem>>, %arg7: memref<16x32xf32, #tpu.memory_space<vmem>>) attributes {dimension_semantics = [#tpu.dimension_semantics<parallel>, #tpu.dimension_semantics<arbitrary>, #tpu.dimension_semantics<arbitrary>], iteration_bounds = array<i64: 1, 2, 1>, scalar_prefetch = 0 : i64, scratch_operands = 1 : i64, tpu.core_type = #tpu.core_type<tc>, window_params = [{transform_indices = @transform_0, window_bounds = array<i64: 16, 32>}, {transform_indices = @transform_1, window_bounds = array<i64: 1, 32, 64>}, {transform_indices = @transform_2, window_bounds = array<i64: 1, 64, 32>}, {transform_indices = @transform_3, window_bounds = array<i64: 16, 32>}]} {
    %c0_i32 = arith.constant 0 : i32
    %0 = arith.cmpi eq, %arg1, %c0_i32 : i32
    %c0_i32_0 = arith.constant 0 : i32
    %1 = arith.cmpi eq, %arg2, %c0_i32_0 : i32
    %2 = arith.andi %0, %1 : i1
    %3 = arith.extui %2 : i1 to i32
    %c0_i32_1 = arith.constant 0 : i32
    %4 = arith.cmpi ne, %3, %c0_i32_1 : i32
    scf.if %4 {
      %c0_13 = arith.constant 0 : index
      %c0_14 = arith.constant 0 : index
      %16 = vector.load %arg3[%c0_13, %c0_14] : memref<16x32xf32, #tpu.memory_space<vmem>>, vector<16x32xf32>
      %c0_15 = arith.constant 0 : index
      %c0_16 = arith.constant 0 : index
      %17 = vector.load %arg7[%c0_15, %c0_16] : memref<16x32xf32, #tpu.memory_space<vmem>>, vector<16x32xf32>
      tpu.vector_store %arg7[%c0_15, %c0_16], %16 {strides = array<i32>} : memref<16x32xf32, #tpu.memory_space<vmem>>, vector<16x32xf32>,
    } else {
    }
    %c0 = arith.constant 0 : index
    %c0_2 = arith.constant 0 : index
    %5 = vector.load %arg7[%c0, %c0_2] : memref<16x32xf32, #tpu.memory_space<vmem>>, vector<16x32xf32>
    %c0_3 = arith.constant 0 : index
    %c0_4 = arith.constant 0 : index
    %c0_5 = arith.constant 0 : index
    %6 = vector.load %arg4[%c0_3, %c0_4, %c0_5] : memref<1x32x64xf32, #tpu.memory_space<vmem>>, vector<1x32x64xf32>
    %7 = vector.shape_cast %6 : vector<1x32x64xf32> to vector<32x64xf32>
    %cst = arith.constant dense<0.000000e+00> : vector<16x64xf32>
    %8 = tpu.matmul %5, %7, %cst {dimension_numbers = #tpu.dot_dimension_numbers<[1], [0], [0], [1], [0, 0, 1, 1], [], []>} : vector<16x32xf32>, vector<32x64xf32>, vector<16x64xf32> -> vector<16x64xf32>
    %c0_6 = arith.constant 0 : index
    %c0_7 = arith.constant 0 : index
    %c0_8 = arith.constant 0 : index
    %9 = vector.load %arg5[%c0_6, %c0_7, %c0_8] : memref<1x64x32xf32, #tpu.memory_space<vmem>>, vector<1x64x32xf32>
    %10 = vector.shape_cast %9 : vector<1x64x32xf32> to vector<64x32xf32>
    %cst_9 = arith.constant dense<0.000000e+00> : vector<16x32xf32>
    %11 = tpu.matmul %8, %10, %cst_9 {dimension_numbers = #tpu.dot_dimension_numbers<[1], [0], [0], [1], [0, 0, 1, 1], [], []>} : vector<16x64xf32>, vector<64x32xf32>, vector<16x32xf32> -> vector<16x32xf32>
    %c0_10 = arith.constant 0 : index
    %c0_11 = arith.constant 0 : index
    %12 = vector.load %arg7[%c0_10, %c0_11] : memref<16x32xf32, #tpu.memory_space<vmem>>, vector<16x32xf32>
    tpu.vector_store %arg7[%c0_10, %c0_11], %11 {strides = array<i32>} : memref<16x32xf32, #tpu.memory_space<vmem>>, vector<16x32xf32>,
    %c1_i32 = arith.constant 1 : i32
    %13 = arith.cmpi eq, %arg1, %c1_i32 : i32
    %14 = arith.extui %13 : i1 to i32
    %c0_i32_12 = arith.constant 0 : i32
    %15 = arith.cmpi ne, %14, %c0_i32_12 : i32
    scf.if %15 {
      %c0_13 = arith.constant 0 : index
      %c0_14 = arith.constant 0 : index
      %16 = vector.load %arg6[%c0_13, %c0_14] : memref<16x32xf32, #tpu.memory_space<vmem>>, vector<16x32xf32>
      tpu.vector_store %arg6[%c0_13, %c0_14], %11 {strides = array<i32>} : memref<16x32xf32, #tpu.memory_space<vmem>>, vector<16x32xf32>,
    } else {
    }
    return
  }
  func.func @transform_0(%arg0: i32, %arg1: i32, %arg2: i32) -> (i32, i32) {
    %c0_i32 = arith.constant 0 : i32
    %c0_i32_0 = arith.constant 0 : i32
    return %arg0, %c0_i32 : i32, i32
  }
  func.func @transform_1(%arg0: i32, %arg1: i32, %arg2: i32) -> (i32, i32, i32) {
    %c0_i32 = arith.constant 0 : i32
    %c0_i32_0 = arith.constant 0 : i32
    return %arg1, %c0_i32, %arg2 : i32, i32, i32
  }
  func.func @transform_2(%arg0: i32, %arg1: i32, %arg2: i32) -> (i32, i32, i32) {
    %c0_i32 = arith.constant 0 : i32
    %c0_i32_0 = arith.constant 0 : i32
    return %arg1, %arg2, %c0_i32 : i32, i32, i32
  }
  func.func @transform_3(%arg0: i32, %arg1: i32, %arg2: i32) -> (i32, i32) {
    %c0_i32 = arith.constant 0 : i32
    %c0_i32_0 = arith.constant 0 : i32
    return %arg0, %c0_i32 : i32, i32
  }
}

</mosaic_0001>

<llo_original>
// kernel: _fused_mlps.1
$region0: #{_fused_mlps.1}
  #allocation0 [shape = 'u32[]', space=smem, size = 0x4, offset = 0x4, fixed_abs, tag = 'smem constant byte address 0x4 - core index']
  #allocation1 [shape = 'u32[144,128]{1,0:T(1,128)}', space=vmem, size = 0x12000, scoped, tag = 'internal scratch']
  #allocation2 [shape = 'f32[16,32]{1,0:T(8,128)}', space=vmem, size = 0x2000, scoped, tag = 'scratch operand']
  %s0 = inlined_call_operand.vmem [shape: f32[16,32], index: 0, kind: input, shape index: {}]
  %s1 = inlined_call_operand.vmem [shape: f32[2,32,64], index: 1, kind: input, shape index: {}]
  %s2 = inlined_call_operand.vmem [shape: f32[2,64,32], index: 2, kind: input, shape index: {}]
  %s3 = inlined_call_operand.hbm [shape: f32[16,32], index: 3, kind: output, shape index: {}]
  %s4 = sld [smem:[#allocation0]]
  $region53: #{_fused_mlps.1} parent=0
    _
  %s6 = ssub.s32 1, %s4
  %s7 = scalar_select 0, %s6, %s4
  $region1: #{_fused_mlps.1} parent=0
    #allocation3 [shape = 'u8[8192]{0}', space=vmem, size = 0x2000, scoped, tag = 'output window, operand 0, single buffered']
    #allocation4 [shape = 's32[2]{0}', space=sflag, size = 0x8, scoped, tag = 'scoped memory for _fused_mlps.1']
    %8 = vsyncpa [#allocation4], 0
    loop: start=0, step=1, limit=4
    $region2: #{_fused_mlps.1} parent=1 // loop_pre_header
      _
    $region3: #{_fused_mlps.1} parent=1 // loop_header
      %s10 = sphi 0, %s14
      %p11 = scmp.ge.s32.totalorder %s10, 4
      %s17 = sphi 0, %s36
      %s18 = sphi 0, %s32
      %s19 = sphi 0, %s28
      %s20 = sphi 0, %s17
      %s21 = sphi 0, %s18
      %s22 = sphi 0, %s19
      %s23 = sphi 0, %s20
      %s24 = sphi 0, %s21
      %s25 = sphi 0, %s22
      %s39 = sphi 0, %s41
      %s42 = sphi 0, %s39
      %s43 = sphi 0, %s42
      %s59 = sphi 0, %s43
      %s67 = sphi 0, %s69
      %s70 = sphi 0, %s67
      %s71 = sphi 0, %s70
      %s87 = sphi 0, %s71
      %s95 = sphi 0, %s97
      %s98 = sphi 0, %s95
      %s99 = sphi 0, %s98
      %s115 = sphi 0, %s99
      %s121 = sphi 0, %s123
      %s124 = sphi 0, %s121
      %s125 = sphi 0, %s124
      %s141 = sphi 0, %s125
    $region4: #{_fused_mlps.1} parent=1 // loop_header_branch
      %13 = sbr.rel (%p11) target = $region8
    $region5: #{_fused_mlps.1} parent=1 // loop_body
      %s15 = ssub.s32 %s10, 1
      %s16 = ssub.s32 %s10, 2
      %s26 = sadd.s32 1, %s19
      %p27 = scmp.ge.s32.totalorder %s26, 1
      %s28 = scalar_select %p27, 0, %s26
      %s29 = sadd.s32 1, %s18
      %s30 = scalar_select %p27, %s29, %s18
      %p31 = scmp.ge.s32.totalorder %s30, 2
      %s32 = scalar_select %p31, 0, %s30
      %s33 = sadd.s32 1, %s17
      %s34 = scalar_select %p31, %s33, %s17
      %p35 = scmp.ge.s32.totalorder %s34, 1
      %s36 = scalar_select %p35, 0, %s34
      %s37 = ssub.s32 %s17, %s36
      %p38 = scmp.eq.s32.totalorder %s37, 0
      %s40 = sadd.s32 %s39, 1
      %s41 = scalar_select %p38, %s39, %s40
      %p44 = pneg %p38
      %p45 = scmp.eq.s32.totalorder %s10, 1
      %p46 = por %p44, %p45
      %p47 = scmp.ne.s32.totalorder %s39, %s42
      %p48 = scmp.eq.s32.totalorder %s10, 0
      %p49 = por %p47, %p48
      %p50 = scmp.ne.s32.totalorder %s39, %s42
      %p51 = scmp.eq.s32.totalorder %s15, 1
      %p52 = por %p50, %p51
      %p53 = scmp.ne.s32.totalorder %s42, %s43
      %p54 = scmp.eq.s32.totalorder %s15, 0
      %p55 = por %p53, %p54
      %p56 = scmp.ne.s32.totalorder %s42, %s43
      %p57 = scmp.eq.s32.totalorder %s16, 1
      %p58 = por %p56, %p57
      %p60 = scmp.ne.s32.totalorder %s43, %s59
      %p61 = scmp.eq.s32.totalorder %s16, 0
      %p62 = por %p60, %p61
      %s63 = ssub.s32 %s18, %s32
      %s64 = ssub.s32 %s19, %s28
      %s65 = sor.u32 %s63, %s64
      %p66 = scmp.eq.s32.totalorder %s65, 0
      %s68 = sadd.s32 %s67, 1
      %s69 = scalar_select %p66, %s67, %s68
      %p72 = pneg %p66
      %p73 = scmp.eq.s32.totalorder %s10, 1
      %p74 = por %p72, %p73
      %p75 = scmp.ne.s32.totalorder %s67, %s70
      %p76 = scmp.eq.s32.totalorder %s10, 0
      %p77 = por %p75, %p76
      %p78 = scmp.ne.s32.totalorder %s67, %s70
      %p79 = scmp.eq.s32.totalorder %s15, 1
      %p80 = por %p78, %p79
      %p81 = scmp.ne.s32.totalorder %s70, %s71
      %p82 = scmp.eq.s32.totalorder %s15, 0
      %p83 = por %p81, %p82
      %p84 = scmp.ne.s32.totalorder %s70, %s71
      %p85 = scmp.eq.s32.totalorder %s16, 1
      %p86 = por %p84, %p85
      %p88 = scmp.ne.s32.totalorder %s71, %s87
      %p89 = scmp.eq.s32.totalorder %s16, 0
      %p90 = por %p88, %p89
      %s91 = ssub.s32 %s18, %s32
      %s92 = ssub.s32 %s19, %s28
      %s93 = sor.u32 %s91, %s92
      %p94 = scmp.eq.s32.totalorder %s93, 0
      %s96 = sadd.s32 %s95, 1
      %s97 = scalar_select %p94, %s95, %s96
      %p100 = pneg %p94
      %p101 = scmp.eq.s32.totalorder %s10, 1
      %p102 = por %p100, %p101
      %p103 = scmp.ne.s32.totalorder %s95, %s98
      %p104 = scmp.eq.s32.totalorder %s10, 0
      %p105 = por %p103, %p104
      %p106 = scmp.ne.s32.totalorder %s95, %s98
      %p107 = scmp.eq.s32.totalorder %s15, 1
      %p108 = por %p106, %p107
      %p109 = scmp.ne.s32.totalorder %s98, %s99
      %p110 = scmp.eq.s32.totalorder %s15, 0
      %p111 = por %p109, %p110
      %p112 = scmp.ne.s32.totalorder %s98, %s99
      %p113 = scmp.eq.s32.totalorder %s16, 1
      %p114 = por %p112, %p113
      %p116 = scmp.ne.s32.totalorder %s99, %s115
      %p117 = scmp.eq.s32.totalorder %s16, 0
      %p118 = por %p116, %p117
      %s119 = ssub.s32 %s17, %s36
      %p120 = scmp.eq.s32.totalorder %s119, 0
      %s122 = sadd.s32 %s121, 1
      %s123 = scalar_select %p120, %s121, %s122
      %p126 = pneg %p120
      %p127 = scmp.eq.s32.totalorder %s10, 1
      %p128 = por %p126, %p127
      %p129 = scmp.ne.s32.totalorder %s121, %s124
      %p130 = scmp.eq.s32.totalorder %s10, 0
      %p131 = por %p129, %p130
      %p132 = scmp.ne.s32.totalorder %s121, %s124
      %p133 = scmp.eq.s32.totalorder %s15, 1
      %p134 = por %p132, %p133
      %p135 = scmp.ne.s32.totalorder %s124, %s125
      %p136 = scmp.eq.s32.totalorder %s15, 0
      %p137 = por %p135, %p136
      %p138 = scmp.ne.s32.totalorder %s124, %s125
      %p139 = scmp.eq.s32.totalorder %s16, 1
      %p140 = por %p138, %p139
      %p142 = scmp.ne.s32.totalorder %s125, %s141
      %p143 = scmp.eq.s32.totalorder %s16, 0
      %p144 = por %p142, %p143
      %p145 = scmp.le.s32.totalorder 1, %s10
      %p146 = scmp.lt.s32.totalorder %s10, 3
      %p147 = pnand %p145, %p146
      %p148 = pneg %p147
      // Predicated region
      $region9: #{_fused_mlps.1} parent=5 // pred_check
        _
      $region10: #{_fused_mlps.1} parent=5 // pred_check_branch
        %150 = sbr.rel (%p147) target = $region12
      $region11: #{_fused_mlps.1} parent=5 // pred_region
        %s151 = ssub.s32 %s10, 1
        // Predicated region
        $region13: #{_fused_mlps.1} parent=11 // pred_check
          %p152 = pneg %p55
        $region14: #{_fused_mlps.1} parent=11 // pred_check_branch
          %154 = sbr.rel (%p152) target = $region16
        $region15: #{_fused_mlps.1} parent=11 // pred_region
          %s155 = smul.u32 2, %s20
          %p156 = scmp.lt.s32.totalorder %s155, 1
          %s157 = scalar_select %p156, %s155, 1
          %s158 = smul.addr %s157, 8
          %s159 = scalar_lea.vmem %s0, %s158
          %s160 = smul.u32 2, %s20
        $region16: #{_fused_mlps.1} parent=11 // pred_fallthru
          _
      $region12: #{_fused_mlps.1} parent=5 // pred_fallthru
        _
      %p161 = scmp.lt.s32.totalorder %s10, 2
      // Predicated region
      $region17: #{_fused_mlps.1} parent=5 // pred_check
        %p162 = pneg %p161
      $region18: #{_fused_mlps.1} parent=5 // pred_check_branch
        %164 = sbr.rel (%p162) target = $region20
      $region19: #{_fused_mlps.1} parent=5 // pred_region
        // Predicated region
        $region21: #{_fused_mlps.1} parent=19 // pred_check
          %p165 = pneg %p77
        $region22: #{_fused_mlps.1} parent=19 // pred_check_branch
          %167 = sbr.rel (%p165) target = $region24
        $region23: #{_fused_mlps.1} parent=19 // pred_region
          %p168 = scmp.lt.s32.totalorder %s18, 1
          %s169 = scalar_select %p168, %s18, 1
          %p170 = scmp.lt.s32.totalorder %s19, 0
          %s171 = scalar_select %p170, %s19, 0
          %s172 = smul.addr %s169, 4
          %s173 = sadd.s32 %s171, %s172
          %s174 = smul.addr %s173, 8
          %s175 = scalar_lea.vmem %s1, %s174
        $region24: #{_fused_mlps.1} parent=19 // pred_fallthru
          _
        // Predicated region
        $region25: #{_fused_mlps.1} parent=19 // pred_check
          %p176 = pneg %p105
        $region26: #{_fused_mlps.1} parent=19 // pred_check_branch
          %178 = sbr.rel (%p176) target = $region28
        $region27: #{_fused_mlps.1} parent=19 // pred_region
          %s179 = smul.u32 8, %s19
          %p180 = scmp.lt.s32.totalorder %s18, 1
          %s181 = scalar_select %p180, %s18, 1
          %p182 = scmp.lt.s32.totalorder %s179, 7
          %s183 = scalar_select %p182, %s179, 7
          %s184 = smul.addr %s181, 8
          %s185 = sadd.s32 %s183, %s184
          %s186 = smul.addr %s185, 8
          %s187 = scalar_lea.vmem %s2, %s186
          %s188 = smul.u32 8, %s19
        $region28: #{_fused_mlps.1} parent=19 // pred_fallthru
          _
      $region20: #{_fused_mlps.1} parent=5 // pred_fallthru
        _
      %p189 = scmp.le.s32.totalorder 1, %s10
      %p190 = scmp.lt.s32.totalorder %s10, 3
      %p191 = pnand %p189, %p190
      %p192 = pneg %p191
      // Predicated region
      $region29: #{_fused_mlps.1} parent=5 // pred_check
        _
      $region30: #{_fused_mlps.1} parent=5 // pred_check_branch
        %194 = sbr.rel (%p191) target = $region32
      $region31: #{_fused_mlps.1} parent=5 // pred_region
        %s195 = ssub.s32 %s10, 1
        %s196 = smul.u32 2, %s20
        %p197 = scmp.lt.s32.totalorder %s196, 1
        %s198 = scalar_select %p197, %s196, 1
        %s199 = smul.addr %s198, 8
        %s200 = scalar_lea.vmem %s0, %s199
        %p201 = pneg %p55
        %p202 = pneg %p52
        %p203 = scmp.lt.s32.totalorder %s21, 1
        %s204 = scalar_select %p203, %s21, 1
        %p205 = scmp.lt.s32.totalorder %s22, 0
        %s206 = scalar_select %p205, %s22, 0
        %s207 = smul.addr %s204, 4
        %s208 = sadd.s32 %s206, %s207
        %s209 = smul.addr %s208, 8
        %s210 = scalar_lea.vmem %s1, %s209
        %p211 = pneg %p83
        %p212 = pneg %p80
        %s213 = smul.u32 8, %s22
        %p214 = scmp.lt.s32.totalorder %s21, 1
        %s215 = scalar_select %p214, %s21, 1
        %p216 = scmp.lt.s32.totalorder %s213, 7
        %s217 = scalar_select %p216, %s213, 7
        %s218 = smul.addr %s215, 8
        %s219 = sadd.s32 %s217, %s218
        %s220 = smul.addr %s219, 8
        %s221 = scalar_lea.vmem %s2, %s220
        %p222 = pneg %p111
        %p223 = pneg %p108
        %p224 = pneg %p137
        %p225 = pneg %p134
        %s226 = smul.u32 2, %s20
        %p227 = scmp.lt.s32.totalorder %s226, 1
        %s228 = scalar_select %p227, %s226, 1
        %s229 = smul.addr %s228, 8
        %s230 = scalar_lea.vmem %s0, %s229
        %s231 = smul.u32 2, %s20
        %p232 = scmp.lt.s32.totalorder %s21, 1
        %s233 = scalar_select %p232, %s21, 1
        %p234 = scmp.lt.s32.totalorder %s22, 0
        %s235 = scalar_select %p234, %s22, 0
        %s236 = smul.addr %s233, 4
        %s237 = sadd.s32 %s235, %s236
        %s238 = smul.addr %s237, 8
        %s239 = scalar_lea.vmem %s1, %s238
        %s240 = smul.u32 8, %s22
        %p241 = scmp.lt.s32.totalorder %s21, 1
        %s242 = scalar_select %p241, %s21, 1
        %p243 = scmp.lt.s32.totalorder %s240, 7
        %s244 = scalar_select %p243, %s240, 7
        %s245 = smul.addr %s242, 8
        %s246 = sadd.s32 %s244, %s245
        %s247 = smul.addr %s246, 8
        %s248 = scalar_lea.vmem %s2, %s247
        %s249 = smul.u32 8, %s22
        %s250 = smul.u32 2, %s20
        %p251 = scmp.eq.s32.totalorder %s21, 0
        %p252 = scmp.eq.s32.totalorder %s22, 0
        %p253 = pnand %p251, %p252
        %p254 = pneg %p253
        // Predicated region
        $region33: #{_fused_mlps.1} parent=31 // pred_check
          _
        $region34: #{_fused_mlps.1} parent=31 // pred_check_branch
          %256 = sbr.rel (%p253) target = $region36
        $region35: #{_fused_mlps.1} parent=31 // pred_region
          %v257 = vld [vmem:[%s230] sm:$0xff]
          %v258 = vld [vmem:[%s230 + $0x8] sm:$0xff]
          %vm259 = vcmask 261120
          %260 = vst.msk [vmem:[#allocation2] sm:$0xff] %vm259, %v257
          %261 = vst.msk [vmem:[#allocation2 + $0x8] sm:$0xff] %vm259, %v258
        $region36: #{_fused_mlps.1} parent=31 // pred_fallthru
          _
        %v262 = vld [vmem:[#allocation2] sm:$0xff]
        %v263 = vld [vmem:[#allocation2 + $0x8] sm:$0xff]
        %v264 = vld [vmem:[%s239] sm:$0xff]
        %v265 = vld [vmem:[%s239 + $0x8] sm:$0xff]
        %v266 = vld [vmem:[%s239 + $0x10] sm:$0xff]
        %v267 = vld [vmem:[%s239 + $0x18] sm:$0xff]
        %vm268 = vcmask 261120
        %v270 = vsel %vm268, %v262, 0
        %v273 = vsel %vm268, %v263, 0
        %275 = vmatprep.subr.mxu0 0.0
        %276 = vmatpush1.msra.mxu0 %v264
        %277 = vmatprep.subr.mxu0 0.0
        %278 = vmatpush1.msra.mxu0 %v265
        %279 = vmatprep.subr.mxu0 0.0
        %280 = vmatpush1.msra.mxu0 %v266
        %281 = vmatprep.subr.mxu0 0.0
        %282 = vmatpush1.msra.mxu0 %v267
        %283 = vmatprep.subr.mxu0 0.0
        %284 = vmatpush1.msra.mxu0 0.0
        %285 = vmatprep.subr.mxu0 0.0
        %286 = vmatpush1.msra.mxu0 0.0
        %287 = vmatprep.subr.mxu0 0.0
        %288 = vmatpush1.msra.mxu0 0.0
        %289 = vmatprep.subr.mxu0 0.0
        %290 = vmatpush1.msra.mxu0 0.0
        %291 = vmatprep.subr.mxu0 0.0
        %292 = vmatpush1.msra.mxu0 0.0
        %293 = vmatprep.subr.mxu0 0.0
        %294 = vmatpush1.msra.mxu0 0.0
        %295 = vmatprep.subr.mxu0 0.0
        %296 = vmatpush1.msra.mxu0 0.0
        %297 = vmatprep.subr.mxu0 0.0
        %298 = vmatpush1.msra.mxu0 0.0
        %299 = vmatprep.subr.mxu0 0.0
        %300 = vmatpush1.msra.mxu0 0.0
        %301 = vmatprep.subr.mxu0 0.0
        %302 = vmatpush1.msra.mxu0 0.0
        %303 = vmatprep.subr.mxu0 0.0
        %304 = vmatpush1.msra.mxu0 0.0
        %305 = vmatprep.subr.mxu0 0.0
        %306 = vmatpush1.msra.mxu0 0.0
        %307 = vmatprep.subr.mxu0 0.0
        %308 = vmatpush1.msra.mxu0 0.0
        %309 = vmatprep.subr.mxu0 0.0
        %310 = vmatpush1.msra.mxu0 0.0
        %311 = vmatprep.subr.mxu0 0.0
        %312 = vmatpush1.msra.mxu0 0.0
        %313 = vmatprep.subr.mxu0 0.0
        %314 = vmatpush1.msra.mxu0 0.0
        %315 = vmatprep.subr.mxu0 0.0
        %316 = vmatpush1.msra.mxu0 0.0
        %317 = vmatprep.subr.mxu0 0.0
        %318 = vmatpush1.msra.mxu0 0.0
        %319 = vmatprep.subr.mxu0 0.0
        %320 = vmatpush1.msra.mxu0 0.0
        %321 = vmatprep.subr.mxu0 0.0
        %322 = vmatpush1.msra.mxu0 0.0
        %323 = vmatprep.subr.mxu0 0.0
        %324 = vmatpush1.msra.mxu0 0.0
        %325 = vmatprep.subr.mxu0 0.0
        %326 = vmatpush1.msra.mxu0 0.0
        %327 = vmatprep.subr.mxu0 0.0
        %328 = vmatpush1.msra.mxu0 0.0
        %329 = vmatprep.subr.mxu0 0.0
        %330 = vmatpush1.msra.mxu0 0.0
        %331 = vmatprep.subr.mxu0 0.0
        %332 = vmatpush1.msra.mxu0 0.0
        %333 = vmatprep.subr.mxu0 0.0
        %334 = vmatpush1.msra.mxu0 0.0
        %335 = vmatprep.subr.mxu0 0.0
        %336 = vmatpush1.msra.mxu0 0.0
        %337 = vmatprep.subr.mxu0 0.0
        %338 = vmatpush1.msra.mxu0 0.0
        %339 = vmatprep.mubr.f32.mxu0 0.0
        %340 = vmatmul.mubr.f32.gmra.mrb[0].mxu0 %v270
        %v341 = vpop.f32.mrb[0].mxu0
        %v342 = vadd.f32 0.0, %v341
        %v343 = vpop.f32.mrb[0].mxu0
        %344 = vmatprep.mubr.f32.mxu0 0.0
        %345 = vmatmul.mubr.f32.gmra.mrb[0].mxu0 %v273
        %v346 = vpop.f32.mrb[0].mxu0
        %v347 = vadd.f32 0.0, %v346
        %v348 = vpop.f32.mrb[0].mxu0
        %349 = vdwg.mxu0
        %v350 = vld [vmem:[%s248] sm:$0xff]
        %v351 = vld [vmem:[%s248 + $0x8] sm:$0xff]
        %v352 = vld [vmem:[%s248 + $0x10] sm:$0xff]
        %v353 = vld [vmem:[%s248 + $0x18] sm:$0xff]
        %v354 = vld [vmem:[%s248 + $0x20] sm:$0xff]
        %v355 = vld [vmem:[%s248 + $0x28] sm:$0xff]
        %v356 = vld [vmem:[%s248 + $0x30] sm:$0xff]
        %v357 = vld [vmem:[%s248 + $0x38] sm:$0xff]
        %vm358 = vcmask 523264
        %v360 = vsel %vm358, %v342, 0
        %v363 = vsel %vm358, %v347, 0
        %365 = vmatprep.subr.mxu0 0.0
        %366 = vmatpush1.msra.mxu0 %v350
        %367 = vmatprep.subr.mxu0 0.0
        %368 = vmatpush1.msra.mxu0 %v351
        %369 = vmatprep.subr.mxu0 0.0
        %370 = vmatpush1.msra.mxu0 %v352
        %371 = vmatprep.subr.mxu0 0.0
        %372 = vmatpush1.msra.mxu0 %v353
        %373 = vmatprep.subr.mxu0 0.0
        %374 = vmatpush1.msra.mxu0 %v354
        %375 = vmatprep.subr.mxu0 0.0
        %376 = vmatpush1.msra.mxu0 %v355
        %377 = vmatprep.subr.mxu0 0.0
        %378 = vmatpush1.msra.mxu0 %v356
        %379 = vmatprep.subr.mxu0 0.0
        %380 = vmatpush1.msra.mxu0 %v357
        %381 = vmatprep.subr.mxu0 0.0
        %382 = vmatpush1.msra.mxu0 0.0
        %383 = vmatprep.subr.mxu0 0.0
        %384 = vmatpush1.msra.mxu0 0.0
        %385 = vmatprep.subr.mxu0 0.0
        %386 = vmatpush1.msra.mxu0 0.0
        %387 = vmatprep.subr.mxu0 0.0
        %388 = vmatpush1.msra.mxu0 0.0
        %389 = vmatprep.subr.mxu0 0.0
        %390 = vmatpush1.msra.mxu0 0.0
        %391 = vmatprep.subr.mxu0 0.0
        %392 = vmatpush1.msra.mxu0 0.0
        %393 = vmatprep.subr.mxu0 0.0
        %394 = vmatpush1.msra.mxu0 0.0
        %395 = vmatprep.subr.mxu0 0.0
        %396 = vmatpush1.msra.mxu0 0.0
        %397 = vmatprep.subr.mxu0 0.0
        %398 = vmatpush1.msra.mxu0 0.0
        %399 = vmatprep.subr.mxu0 0.0
        %400 = vmatpush1.msra.mxu0 0.0
        %401 = vmatprep.subr.mxu0 0.0
        %402 = vmatpush1.msra.mxu0 0.0
        %403 = vmatprep.subr.mxu0 0.0
        %404 = vmatpush1.msra.mxu0 0.0
        %405 = vmatprep.subr.mxu0 0.0
        %406 = vmatpush1.msra.mxu0 0.0
        %407 = vmatprep.subr.mxu0 0.0
        %408 = vmatpush1.msra.mxu0 0.0
        %409 = vmatprep.subr.mxu0 0.0
        %410 = vmatpush1.msra.mxu0 0.0
        %411 = vmatprep.subr.mxu0 0.0
        %412 = vmatpush1.msra.mxu0 0.0
        %413 = vmatprep.subr.mxu0 0.0
        %414 = vmatpush1.msra.mxu0 0.0
        %415 = vmatprep.subr.mxu0 0.0
        %416 = vmatpush1.msra.mxu0 0.0
        %417 = vmatprep.subr.mxu0 0.0
        %418 = vmatpush1.msra.mxu0 0.0
        %419 = vmatprep.subr.mxu0 0.0
        %420 = vmatpush1.msra.mxu0 0.0
        %421 = vmatprep.subr.mxu0 0.0
        %422 = vmatpush1.msra.mxu0 0.0
        %423 = vmatprep.subr.mxu0 0.0
        %424 = vmatpush1.msra.mxu0 0.0
        %425 = vmatprep.subr.mxu0 0.0
        %426 = vmatpush1.msra.mxu0 0.0
        %427 = vmatprep.subr.mxu0 0.0
        %428 = vmatpush1.msra.mxu0 0.0
        %429 = vmatprep.mubr.f32.mxu0 0.0
        %430 = vmatmul.mubr.f32.gmra.mrb[0].mxu0 %v360
        %v431 = vpop.f32.mrb[0].mxu0
        %v432 = vadd.f32 0.0, %v431
        %v433 = vpop.f32.mrb[0].mxu0
        %434 = vmatprep.mubr.f32.mxu0 0.0
        %435 = vmatmul.mubr.f32.gmra.mrb[0].mxu0 %v363
        %v436 = vpop.f32.mrb[0].mxu0
        %v437 = vadd.f32 0.0, %v436
        %v438 = vpop.f32.mrb[0].mxu0
        %439 = vdwg.mxu0
        %440 = vst.msk [vmem:[#allocation2] sm:$0xff] %vm268, %v432
        %441 = vst.msk [vmem:[#allocation2 + $0x8] sm:$0xff] %vm268, %v437
        %p442 = scmp.eq.s32.totalorder %s21, 1
        // Predicated region
        $region37: #{_fused_mlps.1} parent=31 // pred_check
          %p443 = pneg %p442
        $region38: #{_fused_mlps.1} parent=31 // pred_check_branch
          %445 = sbr.rel (%p443) target = $region40
        $region39: #{_fused_mlps.1} parent=31 // pred_region
          %446 = vst.msk [vmem:[#allocation3] sm:$0xff] %vm268, %v432
          %447 = vst.msk [vmem:[#allocation3 + $0x8] sm:$0xff] %vm268, %v437
        $region40: #{_fused_mlps.1} parent=31 // pred_fallthru
          _
        // Predicated region
        $region41: #{_fused_mlps.1} parent=31 // pred_check
          %p448 = pneg %p134
        $region42: #{_fused_mlps.1} parent=31 // pred_check_branch
          %450 = sbr.rel (%p448) target = $region44
        $region43: #{_fused_mlps.1} parent=31 // pred_region
          %s451 = smul.u32 2, %s20
          %s453 = ssub.s32 256, 256
          %454 = vsyncadd [#allocation4], %s453
          %s455 = smul.addr %s451, 128
          %s456 = scalar_lea.hbm %s3, %s455
          %s457 = sshll.u32 [#allocation3], 4
          %s458 = int_to_ptr.vmem [resolvable:$true] %s457
          %463 = dma.vmem_to_hbm [thread:$0]  %s458, 256, %s456, [#allocation4], 128, 128, 8
        $region44: #{_fused_mlps.1} parent=31 // pred_fallthru
          _
        // Predicated region
        $region45: #{_fused_mlps.1} parent=31 // pred_check
          %p464 = pneg %p134
        $region46: #{_fused_mlps.1} parent=31 // pred_check_branch
          %466 = sbr.rel (%p464) target = $region48
        $region47: #{_fused_mlps.1} parent=31 // pred_region
          %467 = dma.done [#allocation4], 256
        $region48: #{_fused_mlps.1} parent=31 // pred_fallthru
          _
      $region32: #{_fused_mlps.1} parent=5 // pred_fallthru
        _
      %p468 = scmp.le.s32.totalorder 2, %s10
      // Predicated region
      $region49: #{_fused_mlps.1} parent=5 // pred_check
        %p469 = pneg %p468
      $region50: #{_fused_mlps.1} parent=5 // pred_check_branch
        %471 = sbr.rel (%p469) target = $region52
      $region51: #{_fused_mlps.1} parent=5 // pred_region
        %s472 = ssub.s32 %s10, 2
      $region52: #{_fused_mlps.1} parent=5 // pred_fallthru
        _
    $region6: #{_fused_mlps.1} parent=1 // loop_footer
      %s14 = sadd.s32 1, %s10
    $region7: #{_fused_mlps.1} parent=1 // loop_footer_branch
      %9 = sbr.rel target = $region3
    $region8: #{_fused_mlps.1} parent=1 // loop_exit
      _
    %473 = vsyncpa [#allocation4], 1
    %s474 = scalar_lea.sflag [#allocation4], 1
    %475 = vsyncpa %s474, 1

</llo_original>
